<compile_context>
chip_gen: v5e
topology: v5e:2x2
jax: 0.10.0
libtpu: 0.0.40
codegen_flags: <defaults>
</compile_context>

<pallas_src>
import jax
import jax.numpy as jnp
from jax.experimental import pallas as pl
from jax.experimental.pallas import tpu as pltpu

_SUBLANE = 8    # f32 sublane count


def linear_kernel(x_ref, w_ref, b_ref, o_ref):
    # One small MXU matmul per (TM, N) tile + a single VPU bias add, then one
    # store of exactly the real output bytes (no lane write-amplification).
    acc = jnp.dot(x_ref[...], w_ref[...], preferred_element_type=jnp.float32)
    o_ref[...] = (acc + b_ref[...]).astype(o_ref.dtype)


def _round_up(v, m):
    return ((v + m - 1) // m) * m


def mlp_forward(x, w, b, *, tm_max=4096, out_dtype=None):
    """y = x @ w + b  (== torch Linear with weight = w.T, bias = b[0])."""
    B, D = x.shape
    Din, N = w.shape
    assert D == Din and b.shape == (1, N)
    out_dtype = x.dtype if out_dtype is None else out_dtype

    # --- batch tiling -------------------------------------------------------
    # Large tiles amortize per-grid-step overhead; ensure >= 2 steps (>= 4 for
    # very large B) so the "parallel" axis can feed both v7x TensorCores.
    grid_m = pl.cdiv(B, tm_max)
    if B >= 2048:
        grid_m = max(grid_m, 2)
    if B >= 8192:
        grid_m = max(grid_m, 4)
    TM = _round_up(pl.cdiv(B, grid_m), _SUBLANE)
    grid_m = pl.cdiv(B, TM)          # last block may be partial (no x padding)

    itemsize_out = jnp.dtype(out_dtype).itemsize
    cost = pl.CostEstimate(
        flops=2 * B * D * N,
        transcendentals=0,
        bytes_accessed=4 * (B * D + D * N + N) + itemsize_out * B * N,
    )

    out = pl.pallas_call(
        linear_kernel,
        out_shape=jax.ShapeDtypeStruct((B, N), out_dtype),
        grid_spec=pl.GridSpec(
            grid=(grid_m,),
            in_specs=[
                pl.BlockSpec((TM, D), lambda i: (i, 0)),   # x: tile batch
                pl.BlockSpec((D, N), lambda i: (0, 0)),    # w: resident
                pl.BlockSpec((1, N), lambda i: (0, 0)),    # b: resident
            ],
            out_specs=pl.BlockSpec((TM, N), lambda i: (i, 0)),
        ),
        compiler_params=pltpu.CompilerParams(
            dimension_semantics=("parallel",),   # megacore shard on v7x
        ),
        cost_estimate=cost,
    )(x, w, b)
    return out


if __name__ == "__main__":
    key = jax.random.PRNGKey(0)
    k_x, k_w, k_b, k_x2, k_x3 = jax.random.split(key, 5)

    batch = 8
    input_size = 32
    out_features = 10

    # Deterministic parameter init (mimics nn.Linear's uniform(-1/sqrt(in), 1/sqrt(in)))
    bound = 1.0 / (input_size ** 0.5)
    w = jax.random.uniform(
        k_w, (input_size, out_features), dtype=jnp.float32,
        minval=-bound, maxval=bound)
    b = jax.random.uniform(
        k_b, (1, out_features), dtype=jnp.float32,
        minval=-bound, maxval=bound)

    # Small case (single grid step, exact tile).
    x = jax.random.normal(k_x, (batch, input_size), dtype=jnp.float32)
    y = jax.block_until_ready(mlp_forward(x, w, b))
    y_ref = x @ w + b
    assert y.shape == (batch, out_features)
    assert jnp.allclose(y, y_ref, atol=1e-5, rtol=1e-5)

    # Non-multiple-of-8 batch: single grid step with a partial (clipped) block.
    x2 = jax.random.normal(k_x2, (300, input_size), dtype=jnp.float32)
    y2 = jax.block_until_ready(mlp_forward(x2, w, b))
    y2_ref = x2 @ w + b
    assert y2.shape == (300, out_features)
    assert jnp.allclose(y2, y2_ref, atol=1e-5, rtol=1e-5)

    # Multi-step grid + partial final block (forces >= 2 steps via B >= 2048).
    x3 = jax.random.normal(k_x3, (2500, input_size), dtype=jnp.float32)
    y3 = jax.block_until_ready(mlp_forward(x3, w, b, tm_max=512))
    y3_ref = x3 @ w + b
    assert y3.shape == (2500, out_features)
    assert jnp.allclose(y3, y3_ref, atol=1e-5, rtol=1e-5)

    # TODO(synk): compute_acc / train (Adam + cross_entropy backward) are
    # training-time methods, not part of forward(); not implemented in Pallas.
    print("KERNEL_OK")
</pallas_src>

<mosaic_0001>
module attributes {stable_mosaic.version = 11 : i64} {
  func.func @linear_kernel(%arg0: i32, %arg1: memref<8x32xf32, #tpu.memory_space<vmem>>, %arg2: memref<32x10xf32, #tpu.memory_space<vmem>>, %arg3: memref<1x10xf32, #tpu.memory_space<vmem>>, %arg4: memref<8x10xf32, #tpu.memory_space<vmem>>) attributes {dimension_semantics = [#tpu.dimension_semantics<parallel>], iteration_bounds = array<i64: 1>, scalar_prefetch = 0 : i64, scratch_operands = 0 : i64, tpu.core_type = #tpu.core_type<tc>, window_params = [{transform_indices = @transform_0, window_bounds = array<i64: 8, 32>}, {pipeline_mode = #tpu.pipeline_mode<synchronous>, transform_indices = @transform_1, window_bounds = array<i64: 32, 10>}, {pipeline_mode = #tpu.pipeline_mode<synchronous>, transform_indices = @transform_2, window_bounds = array<i64: 1, 10>}, {transform_indices = @transform_3, window_bounds = array<i64: 8, 10>}]} {
    %c0 = arith.constant 0 : index
    %c0_0 = arith.constant 0 : index
    %0 = vector.load %arg1[%c0, %c0_0] : memref<8x32xf32, #tpu.memory_space<vmem>>, vector<8x32xf32>
    %c0_1 = arith.constant 0 : index
    %c0_2 = arith.constant 0 : index
    %1 = vector.load %arg2[%c0_1, %c0_2] : memref<32x10xf32, #tpu.memory_space<vmem>>, vector<32x10xf32>
    %cst = arith.constant dense<0.000000e+00> : vector<8x10xf32>
    %2 = tpu.matmul %0, %1, %cst {dimension_numbers = #tpu.dot_dimension_numbers<[1], [0], [0], [1], [0, 0, 1, 1], [], []>} : vector<8x32xf32>, vector<32x10xf32>, vector<8x10xf32> -> vector<8x10xf32>
    %c0_3 = arith.constant 0 : index
    %c0_4 = arith.constant 0 : index
    %3 = vector.load %arg3[%c0_3, %c0_4] : memref<1x10xf32, #tpu.memory_space<vmem>>, vector<1x10xf32>
    %4 = vector.broadcast %3 : vector<1x10xf32> to vector<8x10xf32>
    %5 = arith.addf %2, %4 : vector<8x10xf32>
    %c0_5 = arith.constant 0 : index
    %c0_6 = arith.constant 0 : index
    %6 = vector.load %arg4[%c0_5, %c0_6] : memref<8x10xf32, #tpu.memory_space<vmem>>, vector<8x10xf32>
    tpu.vector_store %arg4[%c0_5, %c0_6], %5 {strides = array<i32>} : memref<8x10xf32, #tpu.memory_space<vmem>>, vector<8x10xf32>,
    return
  }
  func.func @transform_0(%arg0: i32) -> (i32, i32) {
    %c0_i32 = arith.constant 0 : i32
    %c0_i32_0 = arith.constant 0 : i32
    return %arg0, %c0_i32 : i32, i32
  }
  func.func @transform_1(%arg0: i32) -> (i32, i32) {
    %c0_i32 = arith.constant 0 : i32
    %c0_i32_0 = arith.constant 0 : i32
    %c0_i32_1 = arith.constant 0 : i32
    return %c0_i32, %c0_i32_0 : i32, i32
  }
  func.func @transform_2(%arg0: i32) -> (i32, i32) {
    %c0_i32 = arith.constant 0 : i32
    %c0_i32_0 = arith.constant 0 : i32
    %c0_i32_1 = arith.constant 0 : i32
    return %c0_i32, %c0_i32_0 : i32, i32
  }
  func.func @transform_3(%arg0: i32) -> (i32, i32) {
    %c0_i32 = arith.constant 0 : i32
    %c0_i32_0 = arith.constant 0 : i32
    return %arg0, %c0_i32 : i32, i32
  }
}

</mosaic_0001>

<llo_original>
// kernel: tpu_custom_call.1
$region0: #{tpu_custom_call.1}
  #allocation0 [shape = 'u32[]', space=smem, size = 0x4, offset = 0x4, fixed_abs, tag = 'smem constant byte address 0x4 - core index']
  #allocation1 [shape = 'u32[72,128]{1,0:T(1,128)}', space=vmem, size = 0x9000, scoped, tag = 'internal scratch']
  %s0 = inlined_call_operand.vmem [shape: f32[8,32], index: 0, kind: input, shape index: {}]
  %s1 = inlined_call_operand.vmem [shape: f32[32,10], index: 1, kind: input, shape index: {}]
  %s2 = inlined_call_operand.vmem [shape: f32[1,10], index: 2, kind: input, shape index: {}]
  %s3 = inlined_call_operand.hbm [shape: f32[8,10], index: 3, kind: output, shape index: {}]
  %s4 = sld [smem:[#allocation0]]
  $region22: #{tpu_custom_call.1} parent=0
    _
  %s6 = ssub.s32 1, %s4
  %s7 = scalar_select 0, %s6, %s4
  $region1: #{tpu_custom_call.1} parent=0
    #allocation2 [shape = 'u8[4096]{0}', space=vmem, size = 0x1000, scoped, tag = 'output window, operand 0, single buffered']
    #allocation3 [shape = 's32[1]{0}', space=sflag, size = 0x4, scoped, tag = 'scoped memory for tpu_custom_call.1']
    %8 = vsyncpa [#allocation3], 0
    // Predicated region
    $region2: #{tpu_custom_call.1} parent=1 // pred_check
      _
    $region3: #{tpu_custom_call.1} parent=1 // pred_check_branch
      %10 = sbr.rel (0) target = $region5
    $region4: #{tpu_custom_call.1} parent=1 // pred_region
      _
    $region5: #{tpu_custom_call.1} parent=1 // pred_fallthru
      _
    // Predicated region
    $region6: #{tpu_custom_call.1} parent=1 // pred_check
      _
    $region7: #{tpu_custom_call.1} parent=1 // pred_check_branch
      %12 = sbr.rel (0) target = $region9
    $region8: #{tpu_custom_call.1} parent=1 // pred_region
      _
    $region9: #{tpu_custom_call.1} parent=1 // pred_fallthru
      _
    // Predicated region
    $region10: #{tpu_custom_call.1} parent=1 // pred_check
      _
    $region11: #{tpu_custom_call.1} parent=1 // pred_check_branch
      %14 = sbr.rel (0) target = $region13
    $region12: #{tpu_custom_call.1} parent=1 // pred_region
      _
    $region13: #{tpu_custom_call.1} parent=1 // pred_fallthru
      _
    %v15 = vld [vmem:[%s0] sm:$0xff]
    %v16 = vld [vmem:[%s1] sm:$0xff]
    %v17 = vld [vmem:[%s1 + $0x8] sm:$0xff]
    %v18 = vld [vmem:[%s1 + $0x10] sm:$0xff]
    %v19 = vld [vmem:[%s1 + $0x18] sm:$0xff]
    %v20 = vld [vmem:[%s2] sm:$0x1]
    %v22 = vperm.slane %v20, 0
    %vm24 = vcmask 261120
    %v26 = vsel %vm24, %v15, 0
    %28 = vmatpush.msra.mxu0 0.0
    %29 = vmatpush.msra.mxu0 0.0
    %30 = vmatpush.msra.mxu0 0.0
    %31 = vmatpush.msra.mxu0 0.0
    %32 = vmatpush.msra.mxu0 0.0
    %33 = vmatpush.msra.mxu0 0.0
    %34 = vmatpush.msra.mxu0 0.0
    %35 = vmatpush.msra.mxu0 0.0
    %36 = vmatpush.msra.mxu0 0.0
    %37 = vmatpush.msra.mxu0 0.0
    %38 = vmatpush.msra.mxu0 0.0
    %39 = vmatpush.msra.mxu0 0.0
    %40 = vmatpush.msra.mxu0 %v19
    %41 = vmatpush.msra.mxu0 %v18
    %42 = vmatpush.msra.mxu0 %v17
    %43 = vmatpush.msra.mxu0 %v16
    %44 = vmatmul.f32.gmra.mxu0 %v26
    %v45 = vpop.f32.mrf.mxu0
    %v46 = vadd.f32 %v22, %v45
    %47 = vdwg.mxu0
    %vm48 = vcmask 80896
    %49 = vst.msk [vmem:[#allocation2] sm:$0xff] %vm48, %v46
    // Predicated region
    $region14: #{tpu_custom_call.1} parent=1 // pred_check
      _
    $region15: #{tpu_custom_call.1} parent=1 // pred_check_branch
      %51 = sbr.rel (0) target = $region17
    $region16: #{tpu_custom_call.1} parent=1 // pred_region
      %53 = vsyncadd [#allocation3], 0
      %s55 = sshll.u32 [#allocation2], 4
      %s56 = int_to_ptr.vmem [resolvable:$true] %s55
      %s57 = sshll.u32 %s3, 4
      %s58 = int_to_ptr.hbm [resolvable:$true] %s57
      %60 = dma.vmem_to_hbm [thread:$0]  %s56, 128, %s58, [#allocation3]
    $region17: #{tpu_custom_call.1} parent=1 // pred_fallthru
      _
    // Predicated region
    $region18: #{tpu_custom_call.1} parent=1 // pred_check
      _
    $region19: #{tpu_custom_call.1} parent=1 // pred_check_branch
      %62 = sbr.rel (0) target = $region21
    $region20: #{tpu_custom_call.1} parent=1 // pred_region
      %64 = dma.done [#allocation3], 128
    $region21: #{tpu_custom_call.1} parent=1 // pred_fallthru
      _
    %65 = vsyncpa [#allocation3], 1

</llo_original>
